<compile_context>
chip_gen: v7x
topology: tpu7x:2x2x1
jax: 0.10.0
libtpu: 0.0.40
codegen_flags: <defaults>
</compile_context>

<pallas_src>
import jax
import jax.numpy as jnp
from jax import lax
from jax.experimental import pallas as pl
from jax.experimental.pallas import tpu as pltpu

LANE = 128  # TPU lane width; output padded to a multiple of this for unmasked stores


def head_kernel(x_ref, w_ref, mask_ref, o_ref):
    # x_ref:    (1, T, C)       activations for one batch element
    # w_ref:    (C, HP + 2H)    fused weights, columns = [V zero-padded to HP | K | Q*scale]
    # mask_ref: (T, T)          additive causal mask (0 on/below diag, -inf above)
    # o_ref:    (1, T, HP)      lane-dense (128-wide) padded output
    HP = o_ref.shape[-1]
    H = (w_ref.shape[-1] - HP) // 2

    x = x_ref[0]                      # (T, C)
    w = w_ref[...]                    # (C, HP + 2H)

    # One fused MXU push for all three projections.
    qkv = jnp.dot(x, w, preferred_element_type=jnp.float32)      # (T, HP + 2H)
    v = qkv[:, :HP]                   # (T, HP); columns >= H are zeros
    k = qkv[:, HP:HP + H]             # (T, H)
    q = qkv[:, HP + H:HP + 2 * H]     # (T, H); head_size**-0.5 already folded in

    # q @ k^T without materializing k.T: contract dim 1 of q with dim 1 of k.
    scores = lax.dot_general(
        q, k,
        dimension_numbers=(((1,), (1,)), ((), ())),
        preferred_element_type=jnp.float32)                      # (T, T)
    scores = scores + mask_ref[...]   # hoisted causal mask

    # Numerically stable softmax; the reciprocal rides the EUP slot.
    m = jnp.max(scores, axis=-1, keepdims=True)
    e = jnp.exp(scores - m)
    s = jnp.sum(e, axis=-1, keepdims=True)
    p = e * pl.reciprocal(s, approx=True)

    # TODO(synk): attention-weight dropout omitted (eval mode -> identity).

    out = jnp.dot(p, v, preferred_element_type=jnp.float32)      # (T, HP), lane-dense
    o_ref[0] = out.astype(o_ref.dtype)


def head_forward(x, wk, wq, wv):
    B, T, C = x.shape
    H = wk.shape[1]
    HP = ((H + LANE - 1) // LANE) * LANE  # lane-dense padded head size (=128 here)

    # Fold the attention scale into the query weights and fuse the three
    # projections.  V goes first, zero-padded to HP lanes, so p @ v directly
    # produces a 128-lane output (unmasked stores); wrapper slices back to H.
    scale = H ** -0.5
    wv_pad = jnp.zeros((C, HP), x.dtype).at[:, :H].set(wv)
    w_fused = jnp.concatenate([wv_pad, wk, wq * scale], axis=1)   # (C, HP + 2H)

    # Hoisted additive causal mask: 0 where col <= row, -inf strictly above.
    row = lax.broadcasted_iota(jnp.int32, (T, T), 0)
    col = lax.broadcasted_iota(jnp.int32, (T, T), 1)
    mask = jnp.where(col <= row, 0.0, -jnp.inf).astype(jnp.float32)

    out_padded = pl.pallas_call(
        head_kernel,
        out_shape=jax.ShapeDtypeStruct((B, T, HP), jnp.float32),
        grid_spec=pltpu.PrefetchScalarGridSpec(
            num_scalar_prefetch=0,
            grid=(B,),
            in_specs=[
                pl.BlockSpec((1, T, C), lambda b: (b, 0, 0)),
                pl.BlockSpec((C, HP + 2 * H), lambda b: (0, 0)),
                pl.BlockSpec((T, T), lambda b: (0, 0)),
            ],
            out_specs=pl.BlockSpec((1, T, HP), lambda b: (b, 0, 0)),
        ),
        compiler_params=pltpu.CompilerParams(
            dimension_semantics=("parallel",),   # B=2 shards across v7x's 2 TCs
            vmem_limit_bytes=32 * 1024 * 1024,   # explicit budget, safe on v5e/v6e/v7x
        ),
    )(x, w_fused, mask)

    return out_padded[..., :H]


def reference_head(x, wk, wq, wv):
    k = x @ wk
    q = x @ wq
    v = x @ wv
    scale = k.shape[-1] ** (-0.5)
    wei = jnp.einsum("btd,bsd->bts", q, k) * scale
    T = x.shape[1]
    tril = jnp.tril(jnp.ones((T, T)))
    wei = jnp.where(tril == 0, -jnp.inf, wei)
    wei = jax.nn.softmax(wei, axis=-1)
    return wei @ v


if __name__ == "__main__":
    # GptConstants: n_embd=32, block_size (seq) = 8, head_size=16, batch=2
    B, T, C, H = 2, 8, 32, 16

    key = jax.random.PRNGKey(0)
    kx, kk, kq, kv = jax.random.split(key, 4)
    x = jax.random.normal(kx, (B, T, C), dtype=jnp.float32)
    # deterministic "Linear(n_embd, head_size, bias=False)" weights, stored as (C, H)
    wk = jax.random.normal(kk, (C, H), dtype=jnp.float32) * (C ** -0.5)
    wq = jax.random.normal(kq, (C, H), dtype=jnp.float32) * (C ** -0.5)
    wv = jax.random.normal(kv, (C, H), dtype=jnp.float32) * (C ** -0.5)

    out = head_forward(x, wk, wq, wv)
    out = jax.block_until_ready(out)

    ref = reference_head(x, wk, wq, wv)
    assert out.shape == (B, T, H)
    # Approximate (EUP) reciprocal in the softmax norm -> slightly looser tolerance.
    assert jnp.allclose(out, ref, atol=2e-3, rtol=2e-3), "mismatch vs reference"

    print("KERNEL_OK")
</pallas_src>

<mosaic_0001>
module attributes {stable_mosaic.version = 11 : i64} {
  func.func @head_kernel(%arg0: i32, %arg1: memref<1x8x32xf32, #tpu.memory_space<vmem>>, %arg2: memref<32x160xf32, #tpu.memory_space<vmem>>, %arg3: memref<8x8xf32, #tpu.memory_space<vmem>>, %arg4: memref<1x8x128xf32, #tpu.memory_space<vmem>>) attributes {dimension_semantics = [#tpu.dimension_semantics<parallel>], iteration_bounds = array<i64: 2>, scalar_prefetch = 0 : i64, scratch_operands = 0 : i64, tpu.core_type = #tpu.core_type<tc>, window_params = [{transform_indices = @transform_0, window_bounds = array<i64: 1, 8, 32>}, {pipeline_mode = #tpu.pipeline_mode<synchronous>, transform_indices = @transform_1, window_bounds = array<i64: 32, 160>}, {pipeline_mode = #tpu.pipeline_mode<synchronous>, transform_indices = @transform_2, window_bounds = array<i64: 8, 8>}, {transform_indices = @transform_3, window_bounds = array<i64: 1, 8, 128>}]} {
    %c0 = arith.constant 0 : index
    %c0_0 = arith.constant 0 : index
    %c0_1 = arith.constant 0 : index
    %0 = vector.load %arg1[%c0, %c0_0, %c0_1] : memref<1x8x32xf32, #tpu.memory_space<vmem>>, vector<1x8x32xf32>
    %1 = vector.shape_cast %0 : vector<1x8x32xf32> to vector<8x32xf32>
    %c0_2 = arith.constant 0 : index
    %c0_3 = arith.constant 0 : index
    %2 = vector.load %arg2[%c0_2, %c0_3] : memref<32x160xf32, #tpu.memory_space<vmem>>, vector<32x160xf32>
    %cst = arith.constant dense<0.000000e+00> : vector<8x160xf32>
    %3 = tpu.matmul %1, %2, %cst {dimension_numbers = #tpu.dot_dimension_numbers<[1], [0], [0], [1], [0, 0, 1, 1], [], []>} : vector<8x32xf32>, vector<32x160xf32>, vector<8x160xf32> -> vector<8x160xf32>
    %4 = vector.extract_strided_slice %3 {offsets = [0, 0], sizes = [8, 128], strides = [1, 1]} : vector<8x160xf32> to vector<8x128xf32>
    %5 = vector.extract_strided_slice %3 {offsets = [0, 128], sizes = [8, 16], strides = [1, 1]} : vector<8x160xf32> to vector<8x16xf32>
    %6 = vector.extract_strided_slice %3 {offsets = [0, 144], sizes = [8, 16], strides = [1, 1]} : vector<8x160xf32> to vector<8x16xf32>
    %cst_4 = arith.constant dense<0.000000e+00> : vector<8x8xf32>
    %7 = tpu.matmul %6, %5, %cst_4 {dimension_numbers = #tpu.dot_dimension_numbers<[1], [1], [0], [0], [0, 0, 1, 0], [], []>} : vector<8x16xf32>, vector<8x16xf32>, vector<8x8xf32> -> vector<8x8xf32>
    %c0_5 = arith.constant 0 : index
    %c0_6 = arith.constant 0 : index
    %8 = vector.load %arg3[%c0_5, %c0_6] : memref<8x8xf32, #tpu.memory_space<vmem>>, vector<8x8xf32>
    %9 = arith.addf %7, %8 : vector<8x8xf32>
    %cst_7 = arith.constant dense<0xFF800000> : vector<8xf32>
    %10 = vector.multi_reduction <maximumf>, %9, %cst_7 [1] : vector<8x8xf32> to vector<8xf32>
    %11 = vector.shape_cast %10 : vector<8xf32> to vector<8x1xf32>
    %12 = vector.broadcast %11 : vector<8x1xf32> to vector<8x8xf32>
    %13 = arith.subf %9, %12 : vector<8x8xf32>
    %14 = math.exp %13 : vector<8x8xf32>
    %cst_8 = arith.constant dense<0.000000e+00> : vector<8xf32>
    %15 = vector.multi_reduction <add>, %14, %cst_8 [1] : vector<8x8xf32> to vector<8xf32>
    %16 = vector.shape_cast %15 : vector<8xf32> to vector<8x1xf32>
    %17 = tpu.reciprocal %16 {approx = true} : vector<8x1xf32> -> vector<8x1xf32>
    %18 = vector.broadcast %17 : vector<8x1xf32> to vector<8x8xf32>
    %19 = arith.mulf %14, %18 : vector<8x8xf32>
    %cst_9 = arith.constant dense<0.000000e+00> : vector<8x128xf32>
    %20 = tpu.matmul %19, %4, %cst_9 {dimension_numbers = #tpu.dot_dimension_numbers<[1], [0], [0], [1], [0, 0, 1, 1], [], []>} : vector<8x8xf32>, vector<8x128xf32>, vector<8x128xf32> -> vector<8x128xf32>
    %c0_10 = arith.constant 0 : index
    %c0_11 = arith.constant 0 : index
    %c0_12 = arith.constant 0 : index
    %21 = vector.load %arg4[%c0_10, %c0_11, %c0_12] : memref<1x8x128xf32, #tpu.memory_space<vmem>>, vector<1x8x128xf32>
    %22 = vector.shape_cast %21 : vector<1x8x128xf32> to vector<8x128xf32>
    %23 = vector.shape_cast %20 : vector<8x128xf32> to vector<1x8x128xf32>
    tpu.vector_store %arg4[%c0_10, %c0_11, %c0_12], %23 {strides = array<i32>} : memref<1x8x128xf32, #tpu.memory_space<vmem>>, vector<1x8x128xf32>,
    return
  }
  func.func @transform_0(%arg0: i32) -> (i32, i32, i32) {
    %c0_i32 = arith.constant 0 : i32
    %c0_i32_0 = arith.constant 0 : i32
    %c0_i32_1 = arith.constant 0 : i32
    return %arg0, %c0_i32, %c0_i32_0 : i32, i32, i32
  }
  func.func @transform_1(%arg0: i32) -> (i32, i32) {
    %c0_i32 = arith.constant 0 : i32
    %c0_i32_0 = arith.constant 0 : i32
    %c0_i32_1 = arith.constant 0 : i32
    return %c0_i32, %c0_i32_0 : i32, i32
  }
  func.func @transform_2(%arg0: i32) -> (i32, i32) {
    %c0_i32 = arith.constant 0 : i32
    %c0_i32_0 = arith.constant 0 : i32
    %c0_i32_1 = arith.constant 0 : i32
    return %c0_i32, %c0_i32_0 : i32, i32
  }
  func.func @transform_3(%arg0: i32) -> (i32, i32, i32) {
    %c0_i32 = arith.constant 0 : i32
    %c0_i32_0 = arith.constant 0 : i32
    %c0_i32_1 = arith.constant 0 : i32
    return %arg0, %c0_i32, %c0_i32_0 : i32, i32, i32
  }
}

</mosaic_0001>

<llo_original>
// kernel: tpu_custom_call.1
$region0: #{tpu_custom_call.1}
  #allocation0 [shape = 'u32[]', space=smem, size = 0x4, offset = 0x4, fixed_abs, tag = 'smem constant byte address 0x4 - core index']
  #allocation1 [shape = 'u32[144,128]{1,0:T(1,128)}', space=vmem, size = 0x12000, scoped, tag = 'internal scratch']
  %s0 = inlined_call_operand.hbm [shape: f32[2,8,32], index: 0, kind: input, shape index: {}]
  %s1 = inlined_call_operand.hbm [shape: f32[32,160], index: 1, kind: input, shape index: {}]
  %s2 = inlined_call_operand.hbm [shape: f32[8,8], index: 2, kind: input, shape index: {}]
  %s3 = inlined_call_operand.hbm [shape: f32[2,8,128], index: 3, kind: output, shape index: {}]
  %s4 = sld [smem:[#allocation0]]
  $region57: #{tpu_custom_call.1} parent=0
    _
  %s6 = ssub.s32 1, %s4
  %s7 = scalar_select 0, %s6, %s4
  $region1: #{tpu_custom_call.1} parent=0
    #allocation2 [shape = 'u8[8192]{0}', space=vmem, size = 0x2000, scoped, tag = 'input window, operand 0']
    #allocation3 [shape = 's32[2]{0}', space=sflag, size = 0x8, scoped, tag = 'scoped memory for tpu_custom_call.1']
    #allocation4 [shape = 's32[2]{0}', space=sflag, size = 0x8, scoped, tag = 'scoped memory for tpu_custom_call.1']
    #allocation5 [shape = 'u8[32768]{0}', space=vmem, size = 0x8000, scoped, tag = 'input window, operand 1, single buffered']
    #allocation6 [shape = 's32[1]{0}', space=sflag, size = 0x4, scoped, tag = 'scoped memory for tpu_custom_call.1']
    #allocation7 [shape = 'u8[4096]{0}', space=vmem, size = 0x1000, scoped, tag = 'input window, operand 2, single buffered']
    #allocation8 [shape = 'u8[8192]{0}', space=vmem, size = 0x2000, scoped, tag = 'output window, operand 0']
    %8 = vsyncpa [#allocation3], 0
    %s9 = scalar_lea.sflag [#allocation3], 1
    %10 = vsyncpa %s9, 0
    %11 = vsyncpa [#allocation6], 0
    %12 = vsyncpa [#allocation4], 0
    %s13 = scalar_lea.sflag [#allocation4], 1
    %14 = vsyncpa %s13, 0
    loop: start=0, step=1, limit=4
    $region2: #{tpu_custom_call.1} parent=1 // loop_pre_header
      _
    $region3: #{tpu_custom_call.1} parent=1 // loop_header
      %s16 = sphi 0, %s20
      %p17 = scmp.ge.s32.totalorder %s16, 4
      %s26 = sphi 0, %s28
      %s29 = sphi 0, %s26
      %s30 = sphi 0, %s29
      %s46 = sphi 0, %s30
      %s50 = sphi 0, %s50
      %s52 = sphi 0, %s50
      %s53 = sphi 0, %s52
      %s67 = sphi 0, %s53
      %s71 = sphi 0, %s71
      %s73 = sphi 0, %s71
      %s74 = sphi 0, %s73
      %s88 = sphi 0, %s74
      %s94 = sphi 0, %s96
      %s97 = sphi 0, %s94
      %s98 = sphi 0, %s97
      %s114 = sphi 0, %s98
    $region4: #{tpu_custom_call.1} parent=1 // loop_header_branch
      %19 = sbr.rel (%p17) target = $region8
    $region5: #{tpu_custom_call.1} parent=1 // loop_body
      %s21 = ssub.s32 %s16, 1
      %s22 = ssub.s32 %s16, 2
      %s23 = sadd.s32 %s16, 1
      %s24 = ssub.s32 %s16, %s23
      %p25 = scmp.eq.s32.totalorder %s24, 0
      %s27 = sadd.s32 %s26, 1
      %s28 = scalar_select %p25, %s26, %s27
      %p31 = pneg %p25
      %p32 = scmp.eq.s32.totalorder %s16, 1
      %p33 = por %p31, %p32
      %p34 = scmp.ne.s32.totalorder %s26, %s29
      %p35 = scmp.eq.s32.totalorder %s16, 0
      %p36 = por %p34, %p35
      %p37 = scmp.ne.s32.totalorder %s26, %s29
      %p38 = scmp.eq.s32.totalorder %s21, 1
      %p39 = por %p37, %p38
      %p40 = scmp.ne.s32.totalorder %s29, %s30
      %p41 = scmp.eq.s32.totalorder %s21, 0
      %p42 = por %p40, %p41
      %p43 = scmp.ne.s32.totalorder %s29, %s30
      %p44 = scmp.eq.s32.totalorder %s22, 1
      %p45 = por %p43, %p44
      %p47 = scmp.ne.s32.totalorder %s30, %s46
      %p48 = scmp.eq.s32.totalorder %s22, 0
      %p49 = por %p47, %p48
      %s51 = sadd.s32 %s50, 1
      %p54 = scmp.eq.s32.totalorder %s16, 1
      %p55 = scmp.ne.s32.totalorder %s50, %s52
      %p56 = scmp.eq.s32.totalorder %s16, 0
      %p57 = por %p55, %p56
      %p58 = scmp.ne.s32.totalorder %s50, %s52
      %p59 = scmp.eq.s32.totalorder %s21, 1
      %p60 = por %p58, %p59
      %p61 = scmp.ne.s32.totalorder %s52, %s53
      %p62 = scmp.eq.s32.totalorder %s21, 0
      %p63 = por %p61, %p62
      %p64 = scmp.ne.s32.totalorder %s52, %s53
      %p65 = scmp.eq.s32.totalorder %s22, 1
      %p66 = por %p64, %p65
      %p68 = scmp.ne.s32.totalorder %s53, %s67
      %p69 = scmp.eq.s32.totalorder %s22, 0
      %p70 = por %p68, %p69
      %s72 = sadd.s32 %s71, 1
      %p75 = scmp.eq.s32.totalorder %s16, 1
      %p76 = scmp.ne.s32.totalorder %s71, %s73
      %p77 = scmp.eq.s32.totalorder %s16, 0
      %p78 = por %p76, %p77
      %p79 = scmp.ne.s32.totalorder %s71, %s73
      %p80 = scmp.eq.s32.totalorder %s21, 1
      %p81 = por %p79, %p80
      %p82 = scmp.ne.s32.totalorder %s73, %s74
      %p83 = scmp.eq.s32.totalorder %s21, 0
      %p84 = por %p82, %p83
      %p85 = scmp.ne.s32.totalorder %s73, %s74
      %p86 = scmp.eq.s32.totalorder %s22, 1
      %p87 = por %p85, %p86
      %p89 = scmp.ne.s32.totalorder %s74, %s88
      %p90 = scmp.eq.s32.totalorder %s22, 0
      %p91 = por %p89, %p90
      %s92 = ssub.s32 %s16, %s23
      %p93 = scmp.eq.s32.totalorder %s92, 0
      %s95 = sadd.s32 %s94, 1
      %s96 = scalar_select %p93, %s94, %s95
      %p99 = pneg %p93
      %p100 = scmp.eq.s32.totalorder %s16, 1
      %p101 = por %p99, %p100
      %p102 = scmp.ne.s32.totalorder %s94, %s97
      %p103 = scmp.eq.s32.totalorder %s16, 0
      %p104 = por %p102, %p103
      %p105 = scmp.ne.s32.totalorder %s94, %s97
      %p106 = scmp.eq.s32.totalorder %s21, 1
      %p107 = por %p105, %p106
      %p108 = scmp.ne.s32.totalorder %s97, %s98
      %p109 = scmp.eq.s32.totalorder %s21, 0
      %p110 = por %p108, %p109
      %p111 = scmp.ne.s32.totalorder %s97, %s98
      %p112 = scmp.eq.s32.totalorder %s22, 1
      %p113 = por %p111, %p112
      %p115 = scmp.ne.s32.totalorder %s98, %s114
      %p116 = scmp.eq.s32.totalorder %s22, 0
      %p117 = por %p115, %p116
      %p118 = scmp.le.s32.totalorder 1, %s16
      %p119 = scmp.lt.s32.totalorder %s16, 3
      %p120 = pnand %p118, %p119
      %p121 = pneg %p120
      // Predicated region
      $region9: #{tpu_custom_call.1} parent=5 // pred_check
        _
      $region10: #{tpu_custom_call.1} parent=5 // pred_check_branch
        %123 = sbr.rel (%p120) target = $region12
      $region11: #{tpu_custom_call.1} parent=5 // pred_region
        %s124 = ssub.s32 %s16, 1
        // Predicated region
        $region13: #{tpu_custom_call.1} parent=11 // pred_check
          %p125 = pneg %p63
        $region14: #{tpu_custom_call.1} parent=11 // pred_check_branch
          %127 = sbr.rel (%p125) target = $region16
        $region15: #{tpu_custom_call.1} parent=11 // pred_region
          %s129 = ssub.s32 1024, 1024
          %130 = vsyncadd [#allocation6], %s129
          %s131 = sshll.u32 [#allocation5], 4
          %s132 = int_to_ptr.vmem [resolvable:$true] %s131
          %137 = dma.hbm_to_vmem [thread:$0]  %s1, 1024, %s132, [#allocation6], 256, 256, 16
        $region16: #{tpu_custom_call.1} parent=11 // pred_fallthru
          _
        // Predicated region
        $region17: #{tpu_custom_call.1} parent=11 // pred_check
          %p138 = pneg %p84
        $region18: #{tpu_custom_call.1} parent=11 // pred_check_branch
          %140 = sbr.rel (%p138) target = $region20
        $region19: #{tpu_custom_call.1} parent=11 // pred_region
          %s142 = ssub.s32 128, 128
          %143 = vsyncadd [#allocation6], %s142
          %s145 = sshll.u32 [#allocation7], 4
          %s146 = int_to_ptr.vmem [resolvable:$true] %s145
          %148 = dma.hbm_to_vmem [thread:$0]  %s2, 128, %s146, [#allocation6]
        $region20: #{tpu_custom_call.1} parent=11 // pred_fallthru
          _
      $region12: #{tpu_custom_call.1} parent=5 // pred_fallthru
        _
      %p149 = scmp.lt.s32.totalorder %s16, 2
      // Predicated region
      $region21: #{tpu_custom_call.1} parent=5 // pred_check
        %p150 = pneg %p149
      $region22: #{tpu_custom_call.1} parent=5 // pred_check_branch
        %152 = sbr.rel (%p150) target = $region24
      $region23: #{tpu_custom_call.1} parent=5 // pred_region
        // Predicated region
        $region25: #{tpu_custom_call.1} parent=23 // pred_check
          %p153 = pneg %p36
        $region26: #{tpu_custom_call.1} parent=23 // pred_check_branch
          %155 = sbr.rel (%p153) target = $region28
        $region27: #{tpu_custom_call.1} parent=23 // pred_region
          %s156 = sand.u32 %s26, 1
          %s157 = scalar_lea.sflag [#allocation3], %s156
          %s158 = sand.u32 %s26, 1
          %s159 = smul.addr %s158, 8
          %s160 = scalar_lea.vmem [#allocation2], %s159
          %s162 = ssub.s32 128, 128
          %163 = vsyncadd %s157, %s162
          %s164 = smul.addr %s16, 128
          %s165 = scalar_lea.hbm %s0, %s164
          %s167 = sshll.u32 %s160, 4
          %s168 = int_to_ptr.vmem [resolvable:$true] %s167
          %170 = dma.hbm_to_vmem [thread:$0]  %s165, 128, %s168, %s157
        $region28: #{tpu_custom_call.1} parent=23 // pred_fallthru
          _
      $region24: #{tpu_custom_call.1} parent=5 // pred_fallthru
        _
      %p171 = scmp.le.s32.totalorder 1, %s16
      %p172 = scmp.lt.s32.totalorder %s16, 3
      %p173 = pnand %p171, %p172
      %p174 = pneg %p173
      // Predicated region
      $region29: #{tpu_custom_call.1} parent=5 // pred_check
        _
      $region30: #{tpu_custom_call.1} parent=5 // pred_check_branch
        %176 = sbr.rel (%p173) target = $region32
      $region31: #{tpu_custom_call.1} parent=5 // pred_region
        %s177 = ssub.s32 %s16, 1
        %s178 = sand.u32 %s29, 1
        %s179 = scalar_lea.sflag [#allocation3], %s178
        %s180 = sand.u32 %s29, 1
        %s181 = smul.addr %s180, 8
        %s182 = scalar_lea.vmem [#allocation2], %s181
        // Predicated region
        $region33: #{tpu_custom_call.1} parent=31 // pred_check
          %p183 = pneg %p42
        $region34: #{tpu_custom_call.1} parent=31 // pred_check_branch
          %185 = sbr.rel (%p183) target = $region36
        $region35: #{tpu_custom_call.1} parent=31 // pred_region
          %186 = dma.done %s179, 128
        $region36: #{tpu_custom_call.1} parent=31 // pred_fallthru
          _
        // Predicated region
        $region37: #{tpu_custom_call.1} parent=31 // pred_check
          %p187 = pneg %p63
        $region38: #{tpu_custom_call.1} parent=31 // pred_check_branch
          %189 = sbr.rel (%p187) target = $region40
        $region39: #{tpu_custom_call.1} parent=31 // pred_region
          %190 = dma.done [#allocation6], 1024
        $region40: #{tpu_custom_call.1} parent=31 // pred_fallthru
          _
        // Predicated region
        $region41: #{tpu_custom_call.1} parent=31 // pred_check
          %p191 = pneg %p84
        $region42: #{tpu_custom_call.1} parent=31 // pred_check_branch
          %193 = sbr.rel (%p191) target = $region44
        $region43: #{tpu_custom_call.1} parent=31 // pred_region
          %194 = dma.done [#allocation6], 128
        $region44: #{tpu_custom_call.1} parent=31 // pred_fallthru
          _
        %s195 = sand.u32 %s29, 1
        %s196 = scalar_lea.sflag [#allocation3], %s195
        %s197 = sand.u32 %s29, 1
        %s198 = smul.addr %s197, 8
        %s199 = scalar_lea.vmem [#allocation2], %s198
        %p200 = pneg %p42
        %p201 = pneg %p39
        %p202 = pneg %p63
        %p203 = pneg %p60
        %p204 = pneg %p84
        %p205 = pneg %p81
        %p206 = pneg %p110
        %p207 = pneg %p107
        %s208 = sand.u32 %s97, 1
        %s209 = scalar_lea.sflag [#allocation4], %s208
        %s210 = sand.u32 %s97, 1
        %s211 = smul.addr %s210, 8
        %s212 = scalar_lea.vmem [#allocation8], %s211
        %v213 = vld [vmem:[%s182] sm:$0xff]
        %v214 = vld [vmem:[#allocation5] sm:$0xff]
        %v215 = vld [vmem:[#allocation5 + $0x8] sm:$0xff]
        %v216 = vld [vmem:[#allocation5 + $0x10] sm:$0xff]
        %v217 = vld [vmem:[#allocation5 + $0x18] sm:$0xff]
        %v218 = vld [vmem:[#allocation5 + $0x20] sm:$0xff]
        %v219 = vld [vmem:[#allocation5 + $0x28] sm:$0xff]
        %v220 = vld [vmem:[#allocation5 + $0x30] sm:$0xff]
        %v221 = vld [vmem:[#allocation5 + $0x38] sm:$0xff]
        %vm222 = vcmask 261120
        %v224 = vsel %vm222, %v213, 0
        %226 = vmatprep.subr.mxu0 %v215
        %227 = vmatpush1.msra.mxu0 %v214
        %228 = vmatprep.subr.mxu0 %v217
        %229 = vmatpush1.msra.mxu0 %v216
        %230 = vmatprep.subr.mxu0 %v219
        %231 = vmatpush1.msra.mxu0 %v218
        %232 = vmatprep.subr.mxu0 %v221
        %233 = vmatpush1.msra.mxu0 %v220
        %234 = vmatprep.subr.mxu0 0.0
        %235 = vmatpush1.msra.mxu0 0.0
        %236 = vmatprep.subr.mxu0 0.0
        %237 = vmatpush1.msra.mxu0 0.0
        %238 = vmatprep.subr.mxu0 0.0
        %239 = vmatpush1.msra.mxu0 0.0
        %240 = vmatprep.subr.mxu0 0.0
        %241 = vmatpush1.msra.mxu0 0.0
        %242 = vmatprep.subr.mxu0 0.0
        %243 = vmatpush1.msra.mxu0 0.0
        %244 = vmatprep.subr.mxu0 0.0
        %245 = vmatpush1.msra.mxu0 0.0
        %246 = vmatprep.subr.mxu0 0.0
        %247 = vmatpush1.msra.mxu0 0.0
        %248 = vmatprep.subr.mxu0 0.0
        %249 = vmatpush1.msra.mxu0 0.0
        %250 = vmatprep.subr.mxu0 0.0
        %251 = vmatpush1.msra.mxu0 0.0
        %252 = vmatprep.subr.mxu0 0.0
        %253 = vmatpush1.msra.mxu0 0.0
        %254 = vmatprep.subr.mxu0 0.0
        %255 = vmatpush1.msra.mxu0 0.0
        %256 = vmatprep.subr.mxu0 0.0
        %257 = vmatpush1.msra.mxu0 0.0
        %258 = vmatprep.subr.mxu0 0.0
        %259 = vmatpush1.msra.mxu0 0.0
        %260 = vmatprep.subr.mxu0 0.0
        %261 = vmatpush1.msra.mxu0 0.0
        %262 = vmatprep.subr.mxu0 0.0
        %263 = vmatpush1.msra.mxu0 0.0
        %264 = vmatprep.subr.mxu0 0.0
        %265 = vmatpush1.msra.mxu0 0.0
        %266 = vmatprep.subr.mxu0 0.0
        %267 = vmatpush1.msra.mxu0 0.0
        %268 = vmatprep.subr.mxu0 0.0
        %269 = vmatpush1.msra.mxu0 0.0
        %270 = vmatprep.subr.mxu0 0.0
        %271 = vmatpush1.msra.mxu0 0.0
        %272 = vmatprep.subr.mxu0 0.0
        %273 = vmatpush1.msra.mxu0 0.0
        %274 = vmatprep.subr.mxu0 0.0
        %275 = vmatpush1.msra.mxu0 0.0
        %276 = vmatprep.subr.mxu0 0.0
        %277 = vmatpush1.msra.mxu0 0.0
        %278 = vmatprep.subr.mxu0 0.0
        %279 = vmatpush1.msra.mxu0 0.0
        %280 = vmatprep.subr.mxu0 0.0
        %281 = vmatpush1.msra.mxu0 0.0
        %282 = vmatprep.subr.mxu0 0.0
        %283 = vmatpush1.msra.mxu0 0.0
        %284 = vmatprep.subr.mxu0 0.0
        %285 = vmatpush1.msra.mxu0 0.0
        %286 = vmatprep.subr.mxu0 0.0
        %287 = vmatpush1.msra.mxu0 0.0
        %288 = vmatprep.subr.mxu0 0.0
        %289 = vmatpush1.msra.mxu0 0.0
        %290 = vmatprep.mubr.f32.mxu0 0.0
        %291 = vmatmul.mubr.f32.gmra.mrb[0].mxu0 %v224
        %v292 = vpop.f32.mrb[0].mxu0
        %v293 = vadd.f32 0.0, %v292
        %v294 = vpop.f32.mrb[0].mxu0
        %v295 = vadd.f32 0.0, %v294
        %296 = vdwg.mxu0
        %v297 = vld [vmem:[#allocation7] sm:$0xff]
        %299 = vrot.lane.b32.xlu0 %v295, 112
        %v300 = vpop.permute.xlu0 %299
        %vm301 = vcmask 130048
        %v302 = vsel %vm301, %v300, 0
        %v304 = vsel %vm301, %v295, 0
        %306 = vmatprep.subr.mxu0 0.0
        %307 = vmatpush1.xpose.msra.mxu0 %v304
        %308 = vmatprep.subr.mxu0 0.0
        %309 = vmatpush1.xpose.msra.mxu0 0.0
        %310 = vmatprep.subr.mxu0 0.0
        %311 = vmatpush1.xpose.msra.mxu0 0.0
        %312 = vmatprep.subr.mxu0 0.0
        %313 = vmatpush1.xpose.msra.mxu0 0.0
        %314 = vmatprep.subr.mxu0 0.0
        %315 = vmatpush1.xpose.msra.mxu0 0.0
        %316 = vmatprep.subr.mxu0 0.0
        %317 = vmatpush1.xpose.msra.mxu0 0.0
        %318 = vmatprep.subr.mxu0 0.0
        %319 = vmatpush1.xpose.msra.mxu0 0.0
        %320 = vmatprep.subr.mxu0 0.0
        %321 = vmatpush1.xpose.msra.mxu0 0.0
        %322 = vmatprep.subr.mxu0 0.0
        %323 = vmatpush1.xpose.msra.mxu0 0.0
        %324 = vmatprep.subr.mxu0 0.0
        %325 = vmatpush1.xpose.msra.mxu0 0.0
        %326 = vmatprep.subr.mxu0 0.0
        %327 = vmatpush1.xpose.msra.mxu0 0.0
        %328 = vmatprep.subr.mxu0 0.0
        %329 = vmatpush1.xpose.msra.mxu0 0.0
        %330 = vmatprep.subr.mxu0 0.0
        %331 = vmatpush1.xpose.msra.mxu0 0.0
        %332 = vmatprep.subr.mxu0 0.0
        %333 = vmatpush1.xpose.msra.mxu0 0.0
        %334 = vmatprep.subr.mxu0 0.0
        %335 = vmatpush1.xpose.msra.mxu0 0.0
        %336 = vmatprep.subr.mxu0 0.0
        %337 = vmatpush1.xpose.msra.mxu0 0.0
        %338 = vmatprep.subr.mxu0 0.0
        %339 = vmatpush1.xpose.msra.mxu0 0.0
        %340 = vmatprep.subr.mxu0 0.0
        %341 = vmatpush1.xpose.msra.mxu0 0.0
        %342 = vmatprep.subr.mxu0 0.0
        %343 = vmatpush1.xpose.msra.mxu0 0.0
        %344 = vmatprep.subr.mxu0 0.0
        %345 = vmatpush1.xpose.msra.mxu0 0.0
        %346 = vmatprep.subr.mxu0 0.0
        %347 = vmatpush1.xpose.msra.mxu0 0.0
        %348 = vmatprep.subr.mxu0 0.0
        %349 = vmatpush1.xpose.msra.mxu0 0.0
        %350 = vmatprep.subr.mxu0 0.0
        %351 = vmatpush1.xpose.msra.mxu0 0.0
        %352 = vmatprep.subr.mxu0 0.0
        %353 = vmatpush1.xpose.msra.mxu0 0.0
        %354 = vmatprep.subr.mxu0 0.0
        %355 = vmatpush1.xpose.msra.mxu0 0.0
        %356 = vmatprep.subr.mxu0 0.0
        %357 = vmatpush1.xpose.msra.mxu0 0.0
        %358 = vmatprep.subr.mxu0 0.0
        %359 = vmatpush1.xpose.msra.mxu0 0.0
        %360 = vmatprep.subr.mxu0 0.0
        %361 = vmatpush1.xpose.msra.mxu0 0.0
        %362 = vmatprep.subr.mxu0 0.0
        %363 = vmatpush1.xpose.msra.mxu0 0.0
        %364 = vmatprep.subr.mxu0 0.0
        %365 = vmatpush1.xpose.msra.mxu0 0.0
        %366 = vmatprep.subr.mxu0 0.0
        %367 = vmatpush1.xpose.msra.mxu0 0.0
        %368 = vmatprep.subr.mxu0 0.0
        %369 = vmatpush1.xpose.msra.mxu0 0.0
        %370 = vmatprep.mubr.f32.mxu0 0.0
        %371 = vmatmul.mubr.f32.gmra.mrb[0].mxu0 %v302
        %v372 = vpop.f32.mrb[0].mxu0
        %v373 = vadd.f32 %v297, %v372
        %v374 = vpop.f32.mrb[0].mxu0
        %375 = vdwg.mxu0
        %vm376 = vcmask 64512
        %v377 = vsel %vm376, %v373, -inf
        %378 = vmax.xlane.f32.xlu0 %v377
        %v379 = vpop.xlane.xlu0 %378
        %v380 = vsub.f32 %v373, %v379
        %v381 = vmul.f32 %v380, 1.442695
        %v382 = vpow.pop %v381
        %v383 = vsel %vm376, %v382, 0.0
        %384 = vadd.xlane.f32.xlu0 %v383
        %v385 = vpop.xlane.xlu0 %384
        %v386 = vrcp.pop %v385
        %v387 = vmul.f32 %v382, %v386
        %v389 = vsel %vm376, %v387, 0
        %391 = vmatprep.subr.mxu0 0.0
        %392 = vmatpush1.msra.mxu0 %v293
        %393 = vmatprep.subr.mxu0 0.0
        %394 = vmatpush1.msra.mxu0 0.0
        %395 = vmatprep.subr.mxu0 0.0
        %396 = vmatpush1.msra.mxu0 0.0
        %397 = vmatprep.subr.mxu0 0.0
        %398 = vmatpush1.msra.mxu0 0.0
        %399 = vmatprep.subr.mxu0 0.0
        %400 = vmatpush1.msra.mxu0 0.0
        %401 = vmatprep.subr.mxu0 0.0
        %402 = vmatpush1.msra.mxu0 0.0
        %403 = vmatprep.subr.mxu0 0.0
        %404 = vmatpush1.msra.mxu0 0.0
        %405 = vmatprep.subr.mxu0 0.0
        %406 = vmatpush1.msra.mxu0 0.0
        %407 = vmatprep.subr.mxu0 0.0
        %408 = vmatpush1.msra.mxu0 0.0
        %409 = vmatprep.subr.mxu0 0.0
        %410 = vmatpush1.msra.mxu0 0.0
        %411 = vmatprep.subr.mxu0 0.0
        %412 = vmatpush1.msra.mxu0 0.0
        %413 = vmatprep.subr.mxu0 0.0
        %414 = vmatpush1.msra.mxu0 0.0
        %415 = vmatprep.subr.mxu0 0.0
        %416 = vmatpush1.msra.mxu0 0.0
        %417 = vmatprep.subr.mxu0 0.0
        %418 = vmatpush1.msra.mxu0 0.0
        %419 = vmatprep.subr.mxu0 0.0
        %420 = vmatpush1.msra.mxu0 0.0
        %421 = vmatprep.subr.mxu0 0.0
        %422 = vmatpush1.msra.mxu0 0.0
        %423 = vmatprep.subr.mxu0 0.0
        %424 = vmatpush1.msra.mxu0 0.0
        %425 = vmatprep.subr.mxu0 0.0
        %426 = vmatpush1.msra.mxu0 0.0
        %427 = vmatprep.subr.mxu0 0.0
        %428 = vmatpush1.msra.mxu0 0.0
        %429 = vmatprep.subr.mxu0 0.0
        %430 = vmatpush1.msra.mxu0 0.0
        %431 = vmatprep.subr.mxu0 0.0
        %432 = vmatpush1.msra.mxu0 0.0
        %433 = vmatprep.subr.mxu0 0.0
        %434 = vmatpush1.msra.mxu0 0.0
        %435 = vmatprep.subr.mxu0 0.0
        %436 = vmatpush1.msra.mxu0 0.0
        %437 = vmatprep.subr.mxu0 0.0
        %438 = vmatpush1.msra.mxu0 0.0
        %439 = vmatprep.subr.mxu0 0.0
        %440 = vmatpush1.msra.mxu0 0.0
        %441 = vmatprep.subr.mxu0 0.0
        %442 = vmatpush1.msra.mxu0 0.0
        %443 = vmatprep.subr.mxu0 0.0
        %444 = vmatpush1.msra.mxu0 0.0
        %445 = vmatprep.subr.mxu0 0.0
        %446 = vmatpush1.msra.mxu0 0.0
        %447 = vmatprep.subr.mxu0 0.0
        %448 = vmatpush1.msra.mxu0 0.0
        %449 = vmatprep.subr.mxu0 0.0
        %450 = vmatpush1.msra.mxu0 0.0
        %451 = vmatprep.subr.mxu0 0.0
        %452 = vmatpush1.msra.mxu0 0.0
        %453 = vmatprep.subr.mxu0 0.0
        %454 = vmatpush1.msra.mxu0 0.0
        %455 = vmatprep.mubr.f32.mxu0 0.0
        %456 = vmatmul.mubr.f32.gmra.mrb[0].mxu0 %v389
        %v457 = vpop.f32.mrb[0].mxu0
        %v458 = vadd.f32 0.0, %v457
        %v459 = vpop.f32.mrb[0].mxu0
        %460 = vdwg.mxu0
        %461 = vst [vmem:[%s212] sm:$0xff] %v458
        %s462 = sand.u32 %s97, 1
        %s463 = scalar_lea.sflag [#allocation4], %s462
        %s464 = sand.u32 %s97, 1
        %s465 = smul.addr %s464, 8
        %s466 = scalar_lea.vmem [#allocation8], %s465
        // Predicated region
        $region45: #{tpu_custom_call.1} parent=31 // pred_check
          %p467 = pneg %p107
        $region46: #{tpu_custom_call.1} parent=31 // pred_check_branch
          %469 = sbr.rel (%p467) target = $region48
        $region47: #{tpu_custom_call.1} parent=31 // pred_region
          %s471 = ssub.s32 128, 128
          %472 = vsyncadd %s463, %s471
          %s473 = smul.addr %s21, 128
          %s474 = scalar_lea.hbm %s3, %s473
          %s476 = sshll.u32 %s466, 4
          %s477 = int_to_ptr.vmem [resolvable:$true] %s476
          %479 = dma.vmem_to_hbm [thread:$0]  %s477, 128, %s474, %s463
        $region48: #{tpu_custom_call.1} parent=31 // pred_fallthru
          _
      $region32: #{tpu_custom_call.1} parent=5 // pred_fallthru
        _
      %p480 = scmp.le.s32.totalorder 2, %s16
      // Predicated region
      $region49: #{tpu_custom_call.1} parent=5 // pred_check
        %p481 = pneg %p480
      $region50: #{tpu_custom_call.1} parent=5 // pred_check_branch
        %483 = sbr.rel (%p481) target = $region52
      $region51: #{tpu_custom_call.1} parent=5 // pred_region
        %s484 = ssub.s32 %s16, 2
        // Predicated region
        $region53: #{tpu_custom_call.1} parent=51 // pred_check
          %p485 = pneg %p113
        $region54: #{tpu_custom_call.1} parent=51 // pred_check_branch
          %487 = sbr.rel (%p485) target = $region56
        $region55: #{tpu_custom_call.1} parent=51 // pred_region
          %s488 = sand.u32 %s98, 1
          %s489 = scalar_lea.sflag [#allocation4], %s488
          %s490 = sand.u32 %s98, 1
          %s491 = smul.addr %s490, 8
          %s492 = scalar_lea.vmem [#allocation8], %s491
          %493 = dma.done %s489, 128
        $region56: #{tpu_custom_call.1} parent=51 // pred_fallthru
          _
      $region52: #{tpu_custom_call.1} parent=5 // pred_fallthru
        _
    $region6: #{tpu_custom_call.1} parent=1 // loop_footer
      %s20 = sadd.s32 1, %s16
    $region7: #{tpu_custom_call.1} parent=1 // loop_footer_branch
      %15 = sbr.rel target = $region3
    $region8: #{tpu_custom_call.1} parent=1 // loop_exit
      _
    %494 = vsyncpa [#allocation3], 1
    %s495 = scalar_lea.sflag [#allocation3], 1
    %496 = vsyncpa %s495, 1
    %497 = vsyncpa [#allocation6], 1
    %498 = vsyncpa [#allocation4], 1
    %s499 = scalar_lea.sflag [#allocation4], 1
    %500 = vsyncpa %s499, 1

</llo_original>
